<compile_context>
chip_gen: v6e
topology: v6e:2x2x1
jax: 0.10.0
libtpu: 0.0.40
codegen_flags: <defaults>
</compile_context>

<pallas_src>
import jax
import jax.numpy as jnp
from jax.experimental import pallas as pl
from jax.experimental.pallas import tpu as pltpu

_LANE = 128          # TPU vreg lane width
_MAX_LANE = 2048     # widest lane-dense slab we form


def _relu_kernel(x_ref, o_ref):
    # Single vmax on the VPU; the kernel is HBM-bound (pure streaming).
    o_ref[...] = jnp.maximum(x_ref[...], 0)


def _chip_budgets():
    """(target_block_bytes, vmem_limit_bytes) scaled to the chip generation."""
    try:
        vmem = getattr(pltpu.get_tpu_info(), "vmem_capacity_bytes", None)
    except Exception:
        vmem = None
    if vmem is not None and vmem <= 64 * 1024 * 1024:
        # v7x-class: 64 MiB per TC, ~3.2 TB/s HBM -> bigger blocks to hide the
        # ~0.35 us per-step overhead, but leave VMEM headroom (don't hit 64).
        return 8 * 1024 * 1024, 48 * 1024 * 1024
    if vmem is not None and vmem >= 128 * 1024 * 1024:
        # v5e / v6e: 128 MiB physical VMEM; 2x(8+8) MiB buffers fit easily.
        return 8 * 1024 * 1024, 64 * 1024 * 1024
    # Unknown backend: conservative (still above v5e's 16 MiB scoped default).
    return 4 * 1024 * 1024, 32 * 1024 * 1024


def _sublane_rows(itemsize):
    # Rows per packed sublane tile: f32 -> 8, bf16/f16 -> 16, int8/fp8 -> 32.
    return {1: 32, 2: 16, 4: 8}.get(itemsize, 8)


def _choose_tile_rows(rows, lane, itemsize, target_block_bytes):
    sub = _sublane_rows(itemsize)
    if rows <= sub:
        return rows                       # full-extent block (always legal)
    slab_bytes = rows * lane * itemsize
    # Cap block size by the per-generation byte budget.
    cap_bytes = max(sub, (target_block_bytes // (lane * itemsize)) // sub * sub)
    # Enforce a minimum number of grid steps once the slab is big enough to
    # benefit from pipelining / megacore sharding.
    if slab_bytes >= (1 << 20) and rows >= 4 * sub:
        min_steps = 4
    elif slab_bytes >= (256 << 10) and rows >= 2 * sub:
        min_steps = 2
    else:
        min_steps = 1
    if min_steps > 1:
        cap_steps = max(sub, (rows // min_steps) // sub * sub)
        tile_rows = min(cap_bytes, cap_steps)
    else:
        tile_rows = cap_bytes
    if tile_rows >= rows:
        return rows
    return max(sub, (tile_rows // sub) * sub)


def _relu_slab(slab, tile_rows, vmem_limit_bytes):
    """Run the elementwise kernel over a lane-dense (rows, lane) slab."""
    rows, lane = slab.shape
    return pl.pallas_call(
        _relu_kernel,
        out_shape=jax.ShapeDtypeStruct((rows, lane), slab.dtype),
        grid=(pl.cdiv(rows, tile_rows),),
        in_specs=[pl.BlockSpec((tile_rows, lane), lambda i: (i, 0))],
        out_specs=pl.BlockSpec((tile_rows, lane), lambda i: (i, 0)),
        compiler_params=pltpu.CompilerParams(
            dimension_semantics=("parallel",),
            vmem_limit_bytes=vmem_limit_bytes,
        ),
        # TODO(synk): expose input_output_aliases={0: 0} when the caller
        # donates x (halves peak HBM footprint; traffic is unchanged).
    )(slab)


def custom_relu(x, *, max_lane=_MAX_LANE, min_kernel_bytes=4096):
    """Elementwise ReLU (x * (x > 0) semantics) via Pallas."""
    orig_shape = x.shape
    n = x.size
    if n == 0:
        return x
    itemsize = jnp.dtype(x.dtype).itemsize

    if n * itemsize < min_kernel_bytes or n % _LANE != 0:
        # Tiny tensors: a pallas_call's fixed dispatch cost dwarfs the work.
        # Ragged sizes (not a multiple of 128): a fused XLA elementwise is
        # exactly 1 HBM read + 1 write, unlike the old kernel+concat stitch
        # which paid an extra full-tensor copy.
        # TODO(synk): fold a <128-element tail into the last Pallas block with
        # a masked pltpu.store instead of falling back for large ragged sizes.
        return jnp.maximum(x, 0)

    target_block_bytes, vmem_limit_bytes = _chip_budgets()

    # Widest lane dim (multiple of 128, <= max_lane) that divides n, so the
    # reshape to (rows, lane) is metadata-only (no pad, no copy) and every
    # store is a wide unmasked vst.
    chunks = n // _LANE
    c = max_lane // _LANE
    while chunks % c:
        c -= 1
    lane = c * _LANE
    rows = n // lane

    tile_rows = _choose_tile_rows(rows, lane, itemsize, target_block_bytes)
    out = _relu_slab(x.reshape(rows, lane), tile_rows, vmem_limit_bytes)
    return out.reshape(orig_shape)


if __name__ == "__main__":
    key = jax.random.PRNGKey(0)
    relu = jax.jit(custom_relu)

    def ref(t):
        return t * (t > 0).astype(t.dtype)

    # Shape implied by the module's typical NCHW-activation use.
    x = jax.random.normal(key, (2, 4, 16, 16), dtype=jnp.float32)
    y = relu(x)
    jax.block_until_ready(y)
    assert y.shape == x.shape and y.dtype == x.dtype
    assert jnp.allclose(y, ref(x)), "mismatch vs reference (fast path)"

    k1, k2, k3, k4 = jax.random.split(key, 4)

    # Larger f32 tensor: multi-step grid (pipelined, megacore-splittable).
    xb = jax.random.normal(k1, (8, 64, 64, 64), dtype=jnp.float32)
    assert jnp.allclose(relu(xb), ref(xb))

    # bf16: exercises the dtype-aware sublane rounding (16-row packing).
    xh = jax.random.normal(k2, (4, 256, 256), dtype=jnp.bfloat16)
    assert jnp.allclose(relu(xh), ref(xh))

    # Ragged / tiny inputs: pure-JAX fallback path.
    x2 = jax.random.normal(k3, (2, 130), dtype=jnp.float32)   # 260 elements
    assert jnp.allclose(relu(x2), ref(x2))
    x3 = jax.random.normal(k4, (3, 5, 7), dtype=jnp.float32)  # 105 < 128
    assert jnp.allclose(relu(x3), ref(x3))

    print("KERNEL_OK")
</pallas_src>

<mosaic_0001>
module attributes {stable_mosaic.version = 11 : i64} {
  func.func @_relu_kernel(%arg0: i32, %arg1: memref<1x2048xf32, #tpu.memory_space<vmem>>, %arg2: memref<1x2048xf32, #tpu.memory_space<vmem>>) attributes {dimension_semantics = [#tpu.dimension_semantics<parallel>], iteration_bounds = array<i64: 1>, scalar_prefetch = 0 : i64, scratch_operands = 0 : i64, tpu.core_type = #tpu.core_type<tc>, window_params = [{transform_indices = @transform_0, window_bounds = array<i64: 1, 2048>}, {transform_indices = @transform_1, window_bounds = array<i64: 1, 2048>}]} {
    %c0 = arith.constant 0 : index
    %c0_0 = arith.constant 0 : index
    %0 = vector.load %arg1[%c0, %c0_0] : memref<1x2048xf32, #tpu.memory_space<vmem>>, vector<1x2048xf32>
    %cst = arith.constant 0.000000e+00 : f32
    %1 = vector.broadcast %cst : f32 to vector<1x2048xf32>
    %2 = arith.maximumf %0, %1 : vector<1x2048xf32>
    %c0_1 = arith.constant 0 : index
    %c0_2 = arith.constant 0 : index
    %3 = vector.load %arg2[%c0_1, %c0_2] : memref<1x2048xf32, #tpu.memory_space<vmem>>, vector<1x2048xf32>
    tpu.vector_store %arg2[%c0_1, %c0_2], %2 {strides = array<i32>} : memref<1x2048xf32, #tpu.memory_space<vmem>>, vector<1x2048xf32>,
    return
  }
  func.func @transform_0(%arg0: i32) -> (i32, i32) {
    %c0_i32 = arith.constant 0 : i32
    %c0_i32_0 = arith.constant 0 : i32
    return %arg0, %c0_i32 : i32, i32
  }
  func.func @transform_1(%arg0: i32) -> (i32, i32) {
    %c0_i32 = arith.constant 0 : i32
    %c0_i32_0 = arith.constant 0 : i32
    return %arg0, %c0_i32 : i32, i32
  }
}

</mosaic_0001>

<llo_original>
// kernel: custom_relu.1
$region0: #{custom_relu.1}
  #allocation0 [shape = 'u32[]', space=smem, size = 0x4, offset = 0x4, fixed_abs, tag = 'smem constant byte address 0x4 - core index']
  #allocation1 [shape = 'u32[144,128]{1,0:T(1,128)}', space=vmem, size = 0x12000, scoped, tag = 'internal scratch']
  %s0 = inlined_call_operand.vmem [shape: f32[1,2048], index: 0, kind: input, shape index: {}]
  %s1 = inlined_call_operand.vmem [shape: f32[1,2048], index: 1, kind: output, shape index: {}]
  %s2 = sld [smem:[#allocation0]]
  $region14: #{custom_relu.1} parent=0
    _
  %s4 = ssub.s32 1, %s2
  %s5 = scalar_select 0, %s4, %s2
  // Predicated region
  $region2: #{custom_relu.1} parent=0 // pred_check
    _
  $region3: #{custom_relu.1} parent=0 // pred_check_branch
    %7 = sbr.rel (0) target = $region5
  $region4: #{custom_relu.1} parent=0 // pred_region
    _
  $region5: #{custom_relu.1} parent=0 // pred_fallthru
    _
  %v8 = vld [vmem:[%s0] sm:$0xff]
  %v9 = vld [vmem:[%s0 + $0x8] sm:$0xff]
  %v10 = vmax.f32 %v8, 0.0
  %v11 = vmax.f32 %v9, 0.0
  %12 = vst [vmem:[%s1] sm:$0xff] %v10
  %13 = vst [vmem:[%s1 + $0x8] sm:$0xff] %v11
  // Predicated region
  $region6: #{custom_relu.1} parent=0 // pred_check
    _
  $region7: #{custom_relu.1} parent=0 // pred_check_branch
    %15 = sbr.rel (0) target = $region9
  $region8: #{custom_relu.1} parent=0 // pred_region
    _
  $region9: #{custom_relu.1} parent=0 // pred_fallthru
    _
  // Predicated region
  $region10: #{custom_relu.1} parent=0 // pred_check
    _
  $region11: #{custom_relu.1} parent=0 // pred_check_branch
    %17 = sbr.rel (0) target = $region13
  $region12: #{custom_relu.1} parent=0 // pred_region
    _
  $region13: #{custom_relu.1} parent=0 // pred_fallthru
    _

</llo_original>
